<compile_context>
chip_gen: v7x
topology: tpu7x:2x2x1
jax: 0.10.0
libtpu: 0.0.40
codegen_flags: <defaults>
</compile_context>

<pallas_src>
import jax
import jax.numpy as jnp
from jax.experimental import pallas as pl
from jax.experimental.pallas import tpu as pltpu

# ---- model hyper-parameters (small, shapes consistent with a SepFormer) ----
L = 128            # waveform length
K = 16             # encoder kernel size
STRIDE = K // 2    # encoder stride (50% overlap)
F = (L - K) // STRIDE + 1   # number of real frames = 15
F_PAD = 16                  # padded frame count: 8-aligned, one bf16 vreg
N = 128            # encoder feature dim
H = 128            # mask-net hidden dim
NUM_SPK = 2        # number of separated sources

assert F_PAD * STRIDE == L  # the lane-roll framing / overlap-add rely on this


def sepformer_kernel(mix_ref, w_enc_ref, b_enc_ref,
                     w1_ref, b1_ref, w2_ref, b2_ref,
                     w_dec_ref, out_ref):
    """Fused backbone: framing -> encoder -> masks -> decode -> overlap-add.

    mix_ref   : (1, L)          f32   raw waveform (B = 1)
    w_enc_ref : (L, N)          bf16  encoder weights, rows [K:] zero-padded
    b_enc_ref : (1, N)          f32
    w1_ref    : (N, H)          bf16
    b1_ref    : (1, H)          f32
    w2_ref    : (H, NUM_SPK*N)  bf16
    b2_ref    : (1, NUM_SPK*N)  f32
    w_dec_ref : (N, L)          bf16  decoder basis, cols [K:] zero-padded
    out_ref   : (NUM_SPK, L)    f32   separated waveforms (overlap-added)
    """
    mix = mix_ref[...]                                          # (1, L) f32

    # ---- framing: sublane broadcast + ONE strided lane roll ----------------
    # Row f needs mix[f*STRIDE : f*STRIDE+K] in lanes [0:K], i.e. a left
    # rotation by f*STRIDE == lane roll by f*(L-STRIDE) (mod L).  A single
    # strided roll gives every row its shift in one XLU op.  Wrapped lanes
    # [K:] only ever hit the zero-padded rows [K:] of w_enc, so they
    # contribute exactly nothing.  Row F..F_PAD-1 is garbage and is zeroed
    # after the encoder (the encoder bias would otherwise leak through).
    bcast = jnp.broadcast_to(mix, (F_PAD, L))                   # (F_PAD, L)
    frames = pltpu.roll(bcast, shift=0, axis=1,
                        stride=L - STRIDE, stride_axis=0)       # (F_PAD, L)

    # ---- encoder: lane-dense framed matmul + ReLU ---------------------------
    enc = jnp.dot(frames.astype(jnp.bfloat16), w_enc_ref[...],
                  preferred_element_type=jnp.float32) + b_enc_ref[...]
    enc = jnp.maximum(enc, 0.0)                                 # (F_PAD, N) f32
    frame_ids = jax.lax.broadcasted_iota(jnp.int32, (F_PAD, N), 0)
    enc = jnp.where(frame_ids < F, enc, 0.0)                    # zero pad frame

    # ---- mask network: Linear -> ReLU -> Linear -> Sigmoid ------------------
    h = jnp.dot(enc.astype(jnp.bfloat16), w1_ref[...],
                preferred_element_type=jnp.float32) + b1_ref[...]
    h = jnp.maximum(h, 0.0)                                     # (F_PAD, H)
    logits = jnp.dot(h.astype(jnp.bfloat16), w2_ref[...],
                     preferred_element_type=jnp.float32) + b2_ref[...]
    masks = jax.nn.sigmoid(logits)                              # (F_PAD, 2N)

    # ---- per-speaker masking + ONE fused decoder matmul ---------------------
    # Both speaker blocks are now 16 rows -> the sublane concat is 8-aligned.
    masked = jnp.concatenate([enc * masks[:, 0 * N:1 * N],
                              enc * masks[:, 1 * N:2 * N]], axis=0)
    dec = jnp.dot(masked.astype(jnp.bfloat16), w_dec_ref[...],
                  preferred_element_type=jnp.float32)           # (2*F_PAD, L)
    # each frame row holds its K samples in lanes [0:K]; lanes [K:] are exactly
    # zero (zero decoder columns) and the padded-frame rows are all-zero.

    # ---- overlap-add: one strided roll + sublane sum per speaker ------------
    # Frame row f needs a right shift by f*STRIDE; per-row amounts stay in
    # [0, L) so no wrap is relied upon here.
    rows = []
    for s in range(NUM_SPK):
        blk = dec[s * F_PAD:(s + 1) * F_PAD, :]                 # (F_PAD, L)
        shifted = pltpu.roll(blk, shift=0, axis=1,
                             stride=STRIDE, stride_axis=0)
        rows.append(jnp.sum(shifted, axis=0, keepdims=True))    # (1, L)
    out_ref[...] = jnp.concatenate(rows, axis=0)                # (NUM_SPK, L)


def run_backbone(mix, params):
    """mix: (1, L) f32 -> (NUM_SPK, L) f32 separated waveforms (lane-dense)."""
    vmem_spec = pl.BlockSpec(memory_space=pltpu.MemorySpace.VMEM)
    cost = pl.CostEstimate(flops=3_150_000,
                           transcendentals=F_PAD * NUM_SPK * N,
                           bytes_accessed=168_000)

    out = pl.pallas_call(
        sepformer_kernel,
        out_shape=jax.ShapeDtypeStruct((NUM_SPK, L), jnp.float32),
        in_specs=[vmem_spec] * 8,
        out_specs=vmem_spec,
        cost_estimate=cost,
    )(mix.astype(jnp.float32),
      params["w_enc"], params["b_enc"],
      params["w1"], params["b1"],
      params["w2"], params["b2"],
      params["w_dec"])

    # TODO(synk): for streaming / B > 1 workloads, batch chunks under one
    # pallas_call with a grid over batch/time, constant-index_map weight
    # BlockSpecs (weights stay VMEM-resident across grid steps), the batch
    # axis marked "parallel" in dimension_semantics (2x on v7x's two TCs) and
    # vmem_limit_bytes re-derived for v7x's 64 MiB VMEM.  At a single (1,128)
    # chunk one VMEM-resident call is optimal.
    return out


def sepformer_forward(mix, params):
    """Exact semantics of Sepformer.forward (B = 1)."""
    # backbone(mix) is (1, L, num_spk); .squeeze().transpose(0, 1) nets to
    # (num_spk, L).  The kernel already emits that lane-dense slab, so the
    # (L, num_spk) round-trip is skipped (no lane-sparse intermediate).
    output = run_backbone(mix, params)          # (NUM_SPK, L)
    predictions = []
    for i in range(output.shape[0]):
        vd = output[i:i + 1]                    # (1, L)
        predictions.append(vd)
    return predictions
    # TODO(synk): the frozen `diffwave` (GM) submodule holds parameters but is
    # never invoked in forward(), so it is intentionally omitted.


def init_params(key):
    ks = jax.random.split(key, 7)
    s = 0.05
    w_enc = s * jax.random.normal(ks[0], (K, N), jnp.float32)   # true (K, N)
    w_dec = s * jax.random.normal(ks[6], (N, K), jnp.float32)   # true (N, K)
    # zero-pad to lane-dense MXU operands.  NOTE: the framing / overlap-add
    # roll tricks REQUIRE w_enc rows [K:] and w_dec cols [K:] to be exactly
    # zero — enforce this invariant if weights ever come from a checkpoint.
    w_enc_pad = jnp.zeros((L, N), jnp.float32).at[:K, :].set(w_enc)
    w_dec_pad = jnp.zeros((N, L), jnp.float32).at[:, :K].set(w_dec)
    return {
        "w_enc": w_enc_pad.astype(jnp.bfloat16),                       # (L, N)
        "b_enc": s * jax.random.normal(ks[1], (1, N), jnp.float32),
        "w1": (s * jax.random.normal(ks[2], (N, H), jnp.float32)
               ).astype(jnp.bfloat16),
        "b1": s * jax.random.normal(ks[3], (1, H), jnp.float32),
        "w2": (s * jax.random.normal(ks[4], (H, NUM_SPK * N), jnp.float32)
               ).astype(jnp.bfloat16),
        "b2": s * jax.random.normal(ks[5], (1, NUM_SPK * N), jnp.float32),
        "w_dec": w_dec_pad.astype(jnp.bfloat16),                       # (N, L)
    }


if __name__ == "__main__":
    key = jax.random.PRNGKey(0)
    k_in, k_par = jax.random.split(key)
    mix = jax.random.normal(k_in, (1, L), jnp.float32)   # (B=1, L)
    params = init_params(k_par)

    predictions = sepformer_forward(mix, params)
    predictions = [jax.block_until_ready(p) for p in predictions]

    assert len(predictions) == NUM_SPK
    for p in predictions:
        assert p.shape == (1, L), p.shape
        assert jnp.all(jnp.isfinite(p))
    print("KERNEL_OK")
</pallas_src>

<mosaic_0001>
module attributes {stable_mosaic.version = 11 : i64} {
  func.func @sepformer_kernel(%arg0: memref<1x128xf32, #tpu.memory_space<vmem>>, %arg1: memref<128x128xbf16, #tpu.memory_space<vmem>>, %arg2: memref<1x128xf32, #tpu.memory_space<vmem>>, %arg3: memref<128x128xbf16, #tpu.memory_space<vmem>>, %arg4: memref<1x128xf32, #tpu.memory_space<vmem>>, %arg5: memref<128x256xbf16, #tpu.memory_space<vmem>>, %arg6: memref<1x256xf32, #tpu.memory_space<vmem>>, %arg7: memref<128x128xbf16, #tpu.memory_space<vmem>>, %arg8: memref<2x128xf32, #tpu.memory_space<vmem>>) attributes {dimension_semantics = [], scalar_prefetch = 0 : i64, scratch_operands = 0 : i64, tpu.core_type = #tpu.core_type<tc>} {
    %c0 = arith.constant 0 : index
    %c0_0 = arith.constant 0 : index
    %0 = vector.load %arg0[%c0, %c0_0] : memref<1x128xf32, #tpu.memory_space<vmem>>, vector<1x128xf32>
    %1 = vector.shape_cast %0 : vector<1x128xf32> to vector<1x128xf32>
    %2 = vector.broadcast %1 : vector<1x128xf32> to vector<16x128xf32>
    %c0_i32 = arith.constant 0 : i32
    %3 = tpu.dynamic_rotate %2 by %c0_i32 dim 1 {stride = 120 : si32, stride_dimension = 0 : si32} : vector<16x128xf32>, i32 -> vector<16x128xf32>
    %4 = arith.truncf %3 : vector<16x128xf32> to vector<16x128xbf16>
    %c0_1 = arith.constant 0 : index
    %c0_2 = arith.constant 0 : index
    %5 = vector.load %arg1[%c0_1, %c0_2] : memref<128x128xbf16, #tpu.memory_space<vmem>>, vector<128x128xbf16>
    %cst = arith.constant dense<0.000000e+00> : vector<16x128xf32>
    %6 = tpu.matmul %4, %5, %cst {dimension_numbers = #tpu.dot_dimension_numbers<[1], [0], [0], [1], [0, 0, 1, 1], [], []>} : vector<16x128xbf16>, vector<128x128xbf16>, vector<16x128xf32> -> vector<16x128xf32>
    %c0_3 = arith.constant 0 : index
    %c0_4 = arith.constant 0 : index
    %7 = vector.load %arg2[%c0_3, %c0_4] : memref<1x128xf32, #tpu.memory_space<vmem>>, vector<1x128xf32>
    %8 = vector.broadcast %7 : vector<1x128xf32> to vector<16x128xf32>
    %9 = arith.addf %6, %8 : vector<16x128xf32>
    %cst_5 = arith.constant 0.000000e+00 : f32
    %10 = vector.broadcast %cst_5 : f32 to vector<16x128xf32>
    %11 = arith.maximumf %9, %10 : vector<16x128xf32>
    %12 = tpu.iota {dimensions = array<i32: 0>} : vector<16x128xi32>
    %c15_i32 = arith.constant 15 : i32
    %13 = vector.broadcast %c15_i32 : i32 to vector<16x128xi32>
    %14 = arith.cmpi slt, %12, %13 : vector<16x128xi32>
    %cst_6 = arith.constant 0.000000e+00 : f32
    %15 = vector.broadcast %cst_6 : f32 to vector<16x128xf32>
    %16 = arith.select %14, %11, %15 : vector<16x128xi1>, vector<16x128xf32>
    %17 = arith.truncf %16 : vector<16x128xf32> to vector<16x128xbf16>
    %c0_7 = arith.constant 0 : index
    %c0_8 = arith.constant 0 : index
    %18 = vector.load %arg3[%c0_7, %c0_8] : memref<128x128xbf16, #tpu.memory_space<vmem>>, vector<128x128xbf16>
    %cst_9 = arith.constant dense<0.000000e+00> : vector<16x128xf32>
    %19 = tpu.matmul %17, %18, %cst_9 {dimension_numbers = #tpu.dot_dimension_numbers<[1], [0], [0], [1], [0, 0, 1, 1], [], []>} : vector<16x128xbf16>, vector<128x128xbf16>, vector<16x128xf32> -> vector<16x128xf32>
    %c0_10 = arith.constant 0 : index
    %c0_11 = arith.constant 0 : index
    %20 = vector.load %arg4[%c0_10, %c0_11] : memref<1x128xf32, #tpu.memory_space<vmem>>, vector<1x128xf32>
    %21 = vector.broadcast %20 : vector<1x128xf32> to vector<16x128xf32>
    %22 = arith.addf %19, %21 : vector<16x128xf32>
    %cst_12 = arith.constant 0.000000e+00 : f32
    %23 = vector.broadcast %cst_12 : f32 to vector<16x128xf32>
    %24 = arith.maximumf %22, %23 : vector<16x128xf32>
    %25 = arith.truncf %24 : vector<16x128xf32> to vector<16x128xbf16>
    %c0_13 = arith.constant 0 : index
    %c0_14 = arith.constant 0 : index
    %26 = vector.load %arg5[%c0_13, %c0_14] : memref<128x256xbf16, #tpu.memory_space<vmem>>, vector<128x256xbf16>
    %cst_15 = arith.constant dense<0.000000e+00> : vector<16x256xf32>
    %27 = tpu.matmul %25, %26, %cst_15 {dimension_numbers = #tpu.dot_dimension_numbers<[1], [0], [0], [1], [0, 0, 1, 1], [], []>} : vector<16x128xbf16>, vector<128x256xbf16>, vector<16x256xf32> -> vector<16x256xf32>
    %c0_16 = arith.constant 0 : index
    %c0_17 = arith.constant 0 : index
    %28 = vector.load %arg6[%c0_16, %c0_17] : memref<1x256xf32, #tpu.memory_space<vmem>>, vector<1x256xf32>
    %29 = vector.broadcast %28 : vector<1x256xf32> to vector<16x256xf32>
    %30 = arith.addf %27, %29 : vector<16x256xf32>
    %31 = arith.negf %30 : vector<16x256xf32>
    %32 = math.exp %31 : vector<16x256xf32>
    %cst_18 = arith.constant 1.000000e+00 : f32
    %33 = vector.broadcast %cst_18 : f32 to vector<16x256xf32>
    %34 = arith.addf %33, %32 : vector<16x256xf32>
    %35 = arith.divf %33, %34 : vector<16x256xf32>
    %36 = vector.extract_strided_slice %35 {offsets = [0, 0], sizes = [16, 128], strides = [1, 1]} : vector<16x256xf32> to vector<16x128xf32>
    %37 = arith.mulf %16, %36 : vector<16x128xf32>
    %38 = vector.extract_strided_slice %35 {offsets = [0, 128], sizes = [16, 128], strides = [1, 1]} : vector<16x256xf32> to vector<16x128xf32>
    %39 = arith.mulf %16, %38 : vector<16x128xf32>
    %40 = tpu.concatenate %37, %39 in 0 : vector<16x128xf32>, vector<16x128xf32> -> vector<32x128xf32>
    %41 = arith.truncf %40 : vector<32x128xf32> to vector<32x128xbf16>
    %c0_19 = arith.constant 0 : index
    %c0_20 = arith.constant 0 : index
    %42 = vector.load %arg7[%c0_19, %c0_20] : memref<128x128xbf16, #tpu.memory_space<vmem>>, vector<128x128xbf16>
    %cst_21 = arith.constant dense<0.000000e+00> : vector<32x128xf32>
    %43 = tpu.matmul %41, %42, %cst_21 {dimension_numbers = #tpu.dot_dimension_numbers<[1], [0], [0], [1], [0, 0, 1, 1], [], []>} : vector<32x128xbf16>, vector<128x128xbf16>, vector<32x128xf32> -> vector<32x128xf32>
    %44 = vector.extract_strided_slice %43 {offsets = [0, 0], sizes = [16, 128], strides = [1, 1]} : vector<32x128xf32> to vector<16x128xf32>
    %c0_i32_22 = arith.constant 0 : i32
    %45 = tpu.dynamic_rotate %44 by %c0_i32_22 dim 1 {stride = 8 : si32, stride_dimension = 0 : si32} : vector<16x128xf32>, i32 -> vector<16x128xf32>
    %cst_23 = arith.constant dense<0.000000e+00> : vector<128xf32>
    %46 = vector.multi_reduction <add>, %45, %cst_23 [0] : vector<16x128xf32> to vector<128xf32>
    %47 = vector.shape_cast %46 : vector<128xf32> to vector<1x128xf32>
    %48 = vector.extract_strided_slice %43 {offsets = [16, 0], sizes = [16, 128], strides = [1, 1]} : vector<32x128xf32> to vector<16x128xf32>
    %c0_i32_24 = arith.constant 0 : i32
    %49 = tpu.dynamic_rotate %48 by %c0_i32_24 dim 1 {stride = 8 : si32, stride_dimension = 0 : si32} : vector<16x128xf32>, i32 -> vector<16x128xf32>
    %cst_25 = arith.constant dense<0.000000e+00> : vector<128xf32>
    %50 = vector.multi_reduction <add>, %49, %cst_25 [0] : vector<16x128xf32> to vector<128xf32>
    %51 = vector.shape_cast %50 : vector<128xf32> to vector<1x128xf32>
    %52 = tpu.concatenate %47, %51 in 0 : vector<1x128xf32>, vector<1x128xf32> -> vector<2x128xf32>
    %c0_26 = arith.constant 0 : index
    %c0_27 = arith.constant 0 : index
    %53 = vector.load %arg8[%c0_26, %c0_27] : memref<2x128xf32, #tpu.memory_space<vmem>>, vector<2x128xf32>
    tpu.vector_store %arg8[%c0_26, %c0_27], %52 {strides = array<i32>} : memref<2x128xf32, #tpu.memory_space<vmem>>, vector<2x128xf32>,
    return
  }
}

</mosaic_0001>

<llo_original>
// kernel: tpu_custom_call.1
$region0: #{tpu_custom_call.1}
  #allocation0 [shape = 'u32[]', space=smem, size = 0x4, offset = 0x4, fixed_abs, tag = 'smem constant byte address 0x4 - core index']
  #allocation1 [shape = 'u32[144,128]{1,0:T(1,128)}', space=vmem, size = 0x12000, scoped, tag = 'internal scratch']
  %s0 = inlined_call_operand.hbm [shape: f32[1,128], index: 0, kind: input, shape index: {}]
  %s1 = inlined_call_operand.hbm [shape: bf16[128,128], index: 1, kind: input, shape index: {}]
  %s2 = inlined_call_operand.vmem [shape: f32[1,128], index: 2, kind: input, shape index: {}]
  %s3 = inlined_call_operand.hbm [shape: bf16[128,128], index: 3, kind: input, shape index: {}]
  %s4 = inlined_call_operand.vmem [shape: f32[1,128], index: 4, kind: input, shape index: {}]
  %s5 = inlined_call_operand.hbm [shape: bf16[128,256], index: 5, kind: input, shape index: {}]
  %s6 = inlined_call_operand.vmem [shape: f32[1,256], index: 6, kind: input, shape index: {}]
  %s7 = inlined_call_operand.hbm [shape: bf16[128,128], index: 7, kind: input, shape index: {}]
  %s8 = inlined_call_operand.hbm [shape: f32[2,128], index: 8, kind: output, shape index: {}]
  %s9 = sld [smem:[#allocation0]]
  $region62: #{tpu_custom_call.1} parent=0
    _
  %s11 = ssub.s32 1, %s9
  %s12 = scalar_select 0, %s11, %s9
  $region1: #{tpu_custom_call.1} parent=0
    #allocation2 [shape = 'u8[512]{0}', space=vmem, size = 0x400, scoped, tag = 'input window, operand 0, single buffered']
    #allocation3 [shape = 's32[1]{0}', space=sflag, size = 0x4, scoped, tag = 'scoped memory for tpu_custom_call.1']
    #allocation4 [shape = 's32[1]{0}', space=sflag, size = 0x4, scoped, tag = 'scoped memory for tpu_custom_call.1']
    #allocation5 [shape = 'u8[32768]{0}', space=vmem, size = 0x8000, scoped, tag = 'input window, operand 1, single buffered']
    #allocation6 [shape = 's32[1]{0}', space=sflag, size = 0x4, scoped, tag = 'scoped memory for tpu_custom_call.1']
    #allocation7 [shape = 'u8[32768]{0}', space=vmem, size = 0x8000, scoped, tag = 'input window, operand 3, single buffered']
    #allocation8 [shape = 'u8[65536]{0}', space=vmem, size = 0x10000, scoped, tag = 'input window, operand 5, single buffered']
    #allocation9 [shape = 's32[1]{0}', space=sflag, size = 0x4, scoped, tag = 'scoped memory for tpu_custom_call.1']
    #allocation10 [shape = 'u8[32768]{0}', space=vmem, size = 0x8000, scoped, tag = 'input window, operand 7, single buffered']
    #allocation11 [shape = 'u8[1024]{0}', space=vmem, size = 0x400, scoped, tag = 'output window, operand 0, single buffered']
    %13 = vsyncpa [#allocation3], 0
    %14 = vsyncpa [#allocation6], 0
    %15 = vsyncpa [#allocation9], 0
    %16 = vsyncpa [#allocation4], 0
    // Predicated region
    $region2: #{tpu_custom_call.1} parent=1 // pred_check
      _
    $region3: #{tpu_custom_call.1} parent=1 // pred_check_branch
      %18 = sbr.rel (0) target = $region5
    $region4: #{tpu_custom_call.1} parent=1 // pred_region
      %s20 = ssub.s32 16, 16
      %21 = vsyncadd [#allocation3], %s20
      %s23 = sshll.u32 [#allocation2], 4
      %s24 = int_to_ptr.vmem [resolvable:$true] %s23
      %26 = dma.hbm_to_vmem [thread:$0]  %s0, 16, %s24, [#allocation3]
    $region5: #{tpu_custom_call.1} parent=1 // pred_fallthru
      _
    // Predicated region
    $region6: #{tpu_custom_call.1} parent=1 // pred_check
      _
    $region7: #{tpu_custom_call.1} parent=1 // pred_check_branch
      %28 = sbr.rel (0) target = $region9
    $region8: #{tpu_custom_call.1} parent=1 // pred_region
      %s30 = ssub.s32 1024, 1024
      %31 = vsyncadd [#allocation6], %s30
      %s32 = sshll.u32 [#allocation5], 4
      %s33 = int_to_ptr.vmem [resolvable:$true] %s32
      %38 = dma.hbm_to_vmem [thread:$0]  %s1, 1024, %s33, [#allocation6], 64, 64, 4
    $region9: #{tpu_custom_call.1} parent=1 // pred_fallthru
      _
    // Predicated region
    $region10: #{tpu_custom_call.1} parent=1 // pred_check
      _
    $region11: #{tpu_custom_call.1} parent=1 // pred_check_branch
      %40 = sbr.rel (0) target = $region13
    $region12: #{tpu_custom_call.1} parent=1 // pred_region
      _
    $region13: #{tpu_custom_call.1} parent=1 // pred_fallthru
      _
    // Predicated region
    $region14: #{tpu_custom_call.1} parent=1 // pred_check
      _
    $region15: #{tpu_custom_call.1} parent=1 // pred_check_branch
      %42 = sbr.rel (0) target = $region17
    $region16: #{tpu_custom_call.1} parent=1 // pred_region
      %s44 = ssub.s32 1024, 1024
      %45 = vsyncadd [#allocation6], %s44
      %s46 = sshll.u32 [#allocation7], 4
      %s47 = int_to_ptr.vmem [resolvable:$true] %s46
      %52 = dma.hbm_to_vmem [thread:$0]  %s3, 1024, %s47, [#allocation6], 64, 64, 4
    $region17: #{tpu_custom_call.1} parent=1 // pred_fallthru
      _
    // Predicated region
    $region18: #{tpu_custom_call.1} parent=1 // pred_check
      _
    $region19: #{tpu_custom_call.1} parent=1 // pred_check_branch
      %54 = sbr.rel (0) target = $region21
    $region20: #{tpu_custom_call.1} parent=1 // pred_region
      _
    $region21: #{tpu_custom_call.1} parent=1 // pred_fallthru
      _
    // Predicated region
    $region22: #{tpu_custom_call.1} parent=1 // pred_check
      _
    $region23: #{tpu_custom_call.1} parent=1 // pred_check_branch
      %56 = sbr.rel (0) target = $region25
    $region24: #{tpu_custom_call.1} parent=1 // pred_region
      %s58 = ssub.s32 2048, 2048
      %59 = vsyncadd [#allocation9], %s58
      %s60 = sshll.u32 [#allocation8], 4
      %s61 = int_to_ptr.vmem [resolvable:$true] %s60
      %66 = dma.hbm_to_vmem [thread:$0]  %s5, 2048, %s61, [#allocation9], 128, 128, 8
    $region25: #{tpu_custom_call.1} parent=1 // pred_fallthru
      _
    // Predicated region
    $region26: #{tpu_custom_call.1} parent=1 // pred_check
      _
    $region27: #{tpu_custom_call.1} parent=1 // pred_check_branch
      %68 = sbr.rel (0) target = $region29
    $region28: #{tpu_custom_call.1} parent=1 // pred_region
      _
    $region29: #{tpu_custom_call.1} parent=1 // pred_fallthru
      _
    // Predicated region
    $region30: #{tpu_custom_call.1} parent=1 // pred_check
      _
    $region31: #{tpu_custom_call.1} parent=1 // pred_check_branch
      %70 = sbr.rel (0) target = $region33
    $region32: #{tpu_custom_call.1} parent=1 // pred_region
      %s72 = ssub.s32 1024, 1024
      %73 = vsyncadd [#allocation9], %s72
      %s74 = sshll.u32 [#allocation10], 4
      %s75 = int_to_ptr.vmem [resolvable:$true] %s74
      %80 = dma.hbm_to_vmem [thread:$0]  %s7, 1024, %s75, [#allocation9], 64, 64, 4
    $region33: #{tpu_custom_call.1} parent=1 // pred_fallthru
      _
    // Predicated region
    $region34: #{tpu_custom_call.1} parent=1 // pred_check
      _
    $region35: #{tpu_custom_call.1} parent=1 // pred_check_branch
      %82 = sbr.rel (0) target = $region37
    $region36: #{tpu_custom_call.1} parent=1 // pred_region
      %83 = dma.done [#allocation3], 16
    $region37: #{tpu_custom_call.1} parent=1 // pred_fallthru
      _
    // Predicated region
    $region38: #{tpu_custom_call.1} parent=1 // pred_check
      _
    $region39: #{tpu_custom_call.1} parent=1 // pred_check_branch
      %85 = sbr.rel (0) target = $region41
    $region40: #{tpu_custom_call.1} parent=1 // pred_region
      %86 = dma.done [#allocation6], 1024
    $region41: #{tpu_custom_call.1} parent=1 // pred_fallthru
      _
    // Predicated region
    $region42: #{tpu_custom_call.1} parent=1 // pred_check
      _
    $region43: #{tpu_custom_call.1} parent=1 // pred_check_branch
      %88 = sbr.rel (0) target = $region45
    $region44: #{tpu_custom_call.1} parent=1 // pred_region
      %89 = dma.done [#allocation6], 1024
    $region45: #{tpu_custom_call.1} parent=1 // pred_fallthru
      _
    // Predicated region
    $region46: #{tpu_custom_call.1} parent=1 // pred_check
      _
    $region47: #{tpu_custom_call.1} parent=1 // pred_check_branch
      %91 = sbr.rel (0) target = $region49
    $region48: #{tpu_custom_call.1} parent=1 // pred_region
      %92 = dma.done [#allocation9], 2048
    $region49: #{tpu_custom_call.1} parent=1 // pred_fallthru
      _
    // Predicated region
    $region50: #{tpu_custom_call.1} parent=1 // pred_check
      _
    $region51: #{tpu_custom_call.1} parent=1 // pred_check_branch
      %94 = sbr.rel (0) target = $region53
    $region52: #{tpu_custom_call.1} parent=1 // pred_region
      %95 = dma.done [#allocation9], 1024
    $region53: #{tpu_custom_call.1} parent=1 // pred_fallthru
      _
    %v97 = vld [vmem:[#allocation2] sm:$0x1]
    %v99 = vlaneseq
    %v100 = vshrl.u32 %v99, 7
    %v101 = vsub.s32 0, %v100
    %v102 = vrot.slane %v97, %v101
    %105 = vrot.lane.b32.xlu0 %v102, 2048
    %v106 = vpop.permute.xlu0 %105
    %s108 = sor.u32 2048, 64
    %109 = vrot.lane.b32.xlu0 %v102, %s108
    %v110 = vpop.permute.xlu0 %109
    %v111 = vpack.c.bf16 %v110, %v106
    %v112 = vld [vmem:[#allocation5] sm:$0xf]
    %v113 = vld [vmem:[#allocation5 + $0x4] sm:$0xf]
    %v114 = vld [vmem:[#allocation5 + $0x8] sm:$0xf]
    %v115 = vld [vmem:[#allocation5 + $0xc] sm:$0xf]
    %v116 = vld [vmem:[#allocation5 + $0x10] sm:$0xf]
    %v117 = vld [vmem:[#allocation5 + $0x14] sm:$0xf]
    %v118 = vld [vmem:[#allocation5 + $0x18] sm:$0xf]
    %v119 = vld [vmem:[#allocation5 + $0x1c] sm:$0xf]
    %v120 = vld [vmem:[#allocation5 + $0x20] sm:$0xf]
    %v121 = vld [vmem:[#allocation5 + $0x24] sm:$0xf]
    %v122 = vld [vmem:[#allocation5 + $0x28] sm:$0xf]
    %v123 = vld [vmem:[#allocation5 + $0x2c] sm:$0xf]
    %v124 = vld [vmem:[#allocation5 + $0x30] sm:$0xf]
    %v125 = vld [vmem:[#allocation5 + $0x34] sm:$0xf]
    %v126 = vld [vmem:[#allocation5 + $0x38] sm:$0xf]
    %v127 = vld [vmem:[#allocation5 + $0x3c] sm:$0xf]
    %v128 = vld [vmem:[%s2] sm:$0x1]
    %v130 = vlaneseq
    %v131 = vshrl.u32 %v130, 7
    %v132 = vsub.s32 0, %v131
    %v133 = vrot.slane %v128, %v132
    %v151 = vunpack.c.l.b16 %v112
    %v152 = vunpack.c.l.b16 %v113
    %v153 = vunpack.c.l.b16 %v114
    %v154 = vunpack.c.l.b16 %v115
    %v155 = vunpack.c.l.b16 %v116
    %v156 = vunpack.c.l.b16 %v117
    %v157 = vunpack.c.l.b16 %v118
    %v158 = vunpack.c.l.b16 %v119
    %v159 = vunpack.c.l.b16 %v120
    %v160 = vunpack.c.l.b16 %v121
    %v161 = vunpack.c.l.b16 %v122
    %v162 = vunpack.c.l.b16 %v123
    %v163 = vunpack.c.l.b16 %v124
    %v164 = vunpack.c.l.b16 %v125
    %v165 = vunpack.c.l.b16 %v126
    %v166 = vunpack.c.l.b16 %v127
    %v167 = vpack.c.b16 %v152, %v151
    %v168 = vpack.c.b16 %v154, %v153
    %v169 = vpack.c.b16 %v156, %v155
    %v170 = vpack.c.b16 %v158, %v157
    %v171 = vpack.c.b16 %v160, %v159
    %v172 = vpack.c.b16 %v162, %v161
    %v173 = vpack.c.b16 %v164, %v163
    %v174 = vpack.c.b16 %v166, %v165
    %183 = vmatprep.subr.bf16.mxu0 0
    %184 = vmatpush1.bf16.msra.mxu0 %v167
    %185 = vmatprep.subr.bf16.mxu0 0
    %186 = vmatpush1.bf16.msra.mxu0 %v168
    %187 = vmatprep.subr.bf16.mxu0 0
    %188 = vmatpush1.bf16.msra.mxu0 %v169
    %189 = vmatprep.subr.bf16.mxu0 0
    %190 = vmatpush1.bf16.msra.mxu0 %v170
    %191 = vmatprep.subr.bf16.mxu0 0
    %192 = vmatpush1.bf16.msra.mxu0 %v171
    %193 = vmatprep.subr.bf16.mxu0 0
    %194 = vmatpush1.bf16.msra.mxu0 %v172
    %195 = vmatprep.subr.bf16.mxu0 0
    %196 = vmatpush1.bf16.msra.mxu0 %v173
    %197 = vmatprep.subr.bf16.mxu0 0
    %198 = vmatpush1.bf16.msra.mxu0 %v174
    %199 = vmatprep.subr.bf16.mxu0 0
    %200 = vmatpush1.bf16.msra.mxu0 0
    %201 = vmatprep.subr.bf16.mxu0 0
    %202 = vmatpush1.bf16.msra.mxu0 0
    %203 = vmatprep.subr.bf16.mxu0 0
    %204 = vmatpush1.bf16.msra.mxu0 0
    %205 = vmatprep.subr.bf16.mxu0 0
    %206 = vmatpush1.bf16.msra.mxu0 0
    %207 = vmatprep.subr.bf16.mxu0 0
    %208 = vmatpush1.bf16.msra.mxu0 0
    %209 = vmatprep.subr.bf16.mxu0 0
    %210 = vmatpush1.bf16.msra.mxu0 0
    %211 = vmatprep.subr.bf16.mxu0 0
    %212 = vmatpush1.bf16.msra.mxu0 0
    %213 = vmatprep.subr.bf16.mxu0 0
    %214 = vmatpush1.bf16.msra.mxu0 0
    %215 = vmatprep.mubr.bf16.mxu0 0
    %216 = vmatmul.mubr.bf16.gmra.mrb[0].mxu0 %v111
    %v217 = vpop.f32.mrb[0].mxu0
    %v218 = vadd.f32 %v133, %v217
    %v219 = vpop.f32.mrb[0].mxu0
    %v220 = vpop.f32.mrb[0].mxu0
    %v221 = vadd.f32 %v133, %v220
    %v222 = vpop.f32.mrb[0].mxu0
    %223 = vdwg.mxu0
    %v224 = vmax.f32 %v218, 0.0
    %v225 = vmax.f32 %v221, 0.0
    %v226 = vlaneseq
    %v227 = vshrl.u32 %v226, 7
    %v228 = vadd.s32 %v227, 8
    %vm229 = vcmp.lt.s32.totalorder %v227, 15
    %vm230 = vcmp.lt.s32.totalorder %v228, 15
    %v231 = vsel %vm229, %v224, 0.0
    %v232 = vsel %vm230, %v225, 0.0
    %v233 = vpack.c.bf16 %v232, %v231
    %v234 = vld [vmem:[#allocation7] sm:$0xf]
    %v235 = vld [vmem:[#allocation7 + $0x4] sm:$0xf]
    %v236 = vld [vmem:[#allocation7 + $0x8] sm:$0xf]
    %v237 = vld [vmem:[#allocation7 + $0xc] sm:$0xf]
    %v238 = vld [vmem:[#allocation7 + $0x10] sm:$0xf]
    %v239 = vld [vmem:[#allocation7 + $0x14] sm:$0xf]
    %v240 = vld [vmem:[#allocation7 + $0x18] sm:$0xf]
    %v241 = vld [vmem:[#allocation7 + $0x1c] sm:$0xf]
    %v242 = vld [vmem:[#allocation7 + $0x20] sm:$0xf]
    %v243 = vld [vmem:[#allocation7 + $0x24] sm:$0xf]
    %v244 = vld [vmem:[#allocation7 + $0x28] sm:$0xf]
    %v245 = vld [vmem:[#allocation7 + $0x2c] sm:$0xf]
    %v246 = vld [vmem:[#allocation7 + $0x30] sm:$0xf]
    %v247 = vld [vmem:[#allocation7 + $0x34] sm:$0xf]
    %v248 = vld [vmem:[#allocation7 + $0x38] sm:$0xf]
    %v249 = vld [vmem:[#allocation7 + $0x3c] sm:$0xf]
    %v250 = vld [vmem:[%s4] sm:$0x1]
    %v252 = vlaneseq
    %v253 = vshrl.u32 %v252, 7
    %v254 = vsub.s32 0, %v253
    %v255 = vrot.slane %v250, %v254
    %v273 = vunpack.c.l.b16 %v234
    %v274 = vunpack.c.l.b16 %v235
    %v275 = vunpack.c.l.b16 %v236
    %v276 = vunpack.c.l.b16 %v237
    %v277 = vunpack.c.l.b16 %v238
    %v278 = vunpack.c.l.b16 %v239
    %v279 = vunpack.c.l.b16 %v240
    %v280 = vunpack.c.l.b16 %v241
    %v281 = vunpack.c.l.b16 %v242
    %v282 = vunpack.c.l.b16 %v243
    %v283 = vunpack.c.l.b16 %v244
    %v284 = vunpack.c.l.b16 %v245
    %v285 = vunpack.c.l.b16 %v246
    %v286 = vunpack.c.l.b16 %v247
    %v287 = vunpack.c.l.b16 %v248
    %v288 = vunpack.c.l.b16 %v249
    %v289 = vpack.c.b16 %v274, %v273
    %v290 = vpack.c.b16 %v276, %v275
    %v291 = vpack.c.b16 %v278, %v277
    %v292 = vpack.c.b16 %v280, %v279
    %v293 = vpack.c.b16 %v282, %v281
    %v294 = vpack.c.b16 %v284, %v283
    %v295 = vpack.c.b16 %v286, %v285
    %v296 = vpack.c.b16 %v288, %v287
    %305 = vmatprep.subr.bf16.mxu0 0
    %306 = vmatpush1.bf16.msra.mxu0 %v289
    %307 = vmatprep.subr.bf16.mxu0 0
    %308 = vmatpush1.bf16.msra.mxu0 %v290
    %309 = vmatprep.subr.bf16.mxu0 0
    %310 = vmatpush1.bf16.msra.mxu0 %v291
    %311 = vmatprep.subr.bf16.mxu0 0
    %312 = vmatpush1.bf16.msra.mxu0 %v292
    %313 = vmatprep.subr.bf16.mxu0 0
    %314 = vmatpush1.bf16.msra.mxu0 %v293
    %315 = vmatprep.subr.bf16.mxu0 0
    %316 = vmatpush1.bf16.msra.mxu0 %v294
    %317 = vmatprep.subr.bf16.mxu0 0
    %318 = vmatpush1.bf16.msra.mxu0 %v295
    %319 = vmatprep.subr.bf16.mxu0 0
    %320 = vmatpush1.bf16.msra.mxu0 %v296
    %321 = vmatprep.subr.bf16.mxu0 0
    %322 = vmatpush1.bf16.msra.mxu0 0
    %323 = vmatprep.subr.bf16.mxu0 0
    %324 = vmatpush1.bf16.msra.mxu0 0
    %325 = vmatprep.subr.bf16.mxu0 0
    %326 = vmatpush1.bf16.msra.mxu0 0
    %327 = vmatprep.subr.bf16.mxu0 0
    %328 = vmatpush1.bf16.msra.mxu0 0
    %329 = vmatprep.subr.bf16.mxu0 0
    %330 = vmatpush1.bf16.msra.mxu0 0
    %331 = vmatprep.subr.bf16.mxu0 0
    %332 = vmatpush1.bf16.msra.mxu0 0
    %333 = vmatprep.subr.bf16.mxu0 0
    %334 = vmatpush1.bf16.msra.mxu0 0
    %335 = vmatprep.subr.bf16.mxu0 0
    %336 = vmatpush1.bf16.msra.mxu0 0
    %337 = vmatprep.mubr.bf16.mxu0 0
    %338 = vmatmul.mubr.bf16.gmra.mrb[0].mxu0 %v233
    %v339 = vpop.f32.mrb[0].mxu0
    %v340 = vadd.f32 %v255, %v339
    %v341 = vpop.f32.mrb[0].mxu0
    %v342 = vpop.f32.mrb[0].mxu0
    %v343 = vadd.f32 %v255, %v342
    %v344 = vpop.f32.mrb[0].mxu0
    %345 = vdwg.mxu0
    %v346 = vmax.f32 %v340, 0.0
    %v347 = vmax.f32 %v343, 0.0
    %v348 = vpack.c.bf16 %v347, %v346
    %v349 = vld [vmem:[#allocation8] sm:$0xff]
    %v350 = vld [vmem:[#allocation8 + $0x8] sm:$0xff]
    %v351 = vld [vmem:[#allocation8 + $0x10] sm:$0xff]
    %v352 = vld [vmem:[#allocation8 + $0x18] sm:$0xff]
    %v353 = vld [vmem:[#allocation8 + $0x20] sm:$0xff]
    %v354 = vld [vmem:[#allocation8 + $0x28] sm:$0xff]
    %v355 = vld [vmem:[#allocation8 + $0x30] sm:$0xff]
    %v356 = vld [vmem:[#allocation8 + $0x38] sm:$0xff]
    %v357 = vld [vmem:[#allocation8 + $0x40] sm:$0xff]
    %v358 = vld [vmem:[#allocation8 + $0x48] sm:$0xff]
    %v359 = vld [vmem:[#allocation8 + $0x50] sm:$0xff]
    %v360 = vld [vmem:[#allocation8 + $0x58] sm:$0xff]
    %v361 = vld [vmem:[#allocation8 + $0x60] sm:$0xff]
    %v362 = vld [vmem:[#allocation8 + $0x68] sm:$0xff]
    %v363 = vld [vmem:[#allocation8 + $0x70] sm:$0xff]
    %v364 = vld [vmem:[#allocation8 + $0x78] sm:$0xff]
    %v365 = vld [vmem:[%s6] sm:$0x3]
    %v367 = vlaneseq
    %v368 = vshrl.u32 %v367, 7
    %v369 = vsub.s32 0, %v368
    %v370 = vrot.slane %v365, %v369
    %v371 = vlaneseq
    %v372 = vshrl.u32 %v371, 7
    %v373 = vsub.s32 1, %v372
    %v374 = vrot.slane %v365, %v373
    %v393 = vunpack.c.l.b16 %v349
    %v394 = vunpack.c.h.b16 %v349
    %v395 = vunpack.c.l.b16 %v350
    %v396 = vunpack.c.h.b16 %v350
    %v397 = vunpack.c.l.b16 %v351
    %v398 = vunpack.c.h.b16 %v351
    %v399 = vunpack.c.l.b16 %v352
    %v400 = vunpack.c.h.b16 %v352
    %v401 = vunpack.c.l.b16 %v353
    %v402 = vunpack.c.h.b16 %v353
    %v403 = vunpack.c.l.b16 %v354
    %v404 = vunpack.c.h.b16 %v354
    %v405 = vunpack.c.l.b16 %v355
    %v406 = vunpack.c.h.b16 %v355
    %v407 = vunpack.c.l.b16 %v356
    %v408 = vunpack.c.h.b16 %v356
    %v409 = vunpack.c.l.b16 %v357
    %v410 = vunpack.c.h.b16 %v357
    %v411 = vunpack.c.l.b16 %v358
    %v412 = vunpack.c.h.b16 %v358
    %v413 = vunpack.c.l.b16 %v359
    %v414 = vunpack.c.h.b16 %v359
    %v415 = vunpack.c.l.b16 %v360
    %v416 = vunpack.c.h.b16 %v360
    %v417 = vunpack.c.l.b16 %v361
    %v418 = vunpack.c.h.b16 %v361
    %v419 = vunpack.c.l.b16 %v362
    %v420 = vunpack.c.h.b16 %v362
    %v421 = vunpack.c.l.b16 %v363
    %v422 = vunpack.c.h.b16 %v363
    %v423 = vunpack.c.l.b16 %v364
    %v424 = vunpack.c.h.b16 %v364
    %v425 = vpack.c.b16 %v395, %v393
    %v426 = vpack.c.b16 %v396, %v394
    %v427 = vpack.c.b16 %v399, %v397
    %v428 = vpack.c.b16 %v400, %v398
    %v429 = vpack.c.b16 %v403, %v401
    %v430 = vpack.c.b16 %v404, %v402
    %v431 = vpack.c.b16 %v407, %v405
    %v432 = vpack.c.b16 %v408, %v406
    %v433 = vpack.c.b16 %v411, %v409
    %v434 = vpack.c.b16 %v412, %v410
    %v435 = vpack.c.b16 %v415, %v413
    %v436 = vpack.c.b16 %v416, %v414
    %v437 = vpack.c.b16 %v419, %v417
    %v438 = vpack.c.b16 %v420, %v418
    %v439 = vpack.c.b16 %v423, %v421
    %v440 = vpack.c.b16 %v424, %v422
    %457 = vmatprep.subr.bf16.mxu0 %v426
    %458 = vmatpush1.bf16.msra.mxu0 %v425
    %459 = vmatprep.subr.bf16.mxu0 %v428
    %460 = vmatpush1.bf16.msra.mxu0 %v427
    %461 = vmatprep.subr.bf16.mxu0 %v430
    %462 = vmatpush1.bf16.msra.mxu0 %v429
    %463 = vmatprep.subr.bf16.mxu0 %v432
    %464 = vmatpush1.bf16.msra.mxu0 %v431
    %465 = vmatprep.subr.bf16.mxu0 %v434
    %466 = vmatpush1.bf16.msra.mxu0 %v433
    %467 = vmatprep.subr.bf16.mxu0 %v436
    %468 = vmatpush1.bf16.msra.mxu0 %v435
    %469 = vmatprep.subr.bf16.mxu0 %v438
    %470 = vmatpush1.bf16.msra.mxu0 %v437
    %471 = vmatprep.subr.bf16.mxu0 %v440
    %472 = vmatpush1.bf16.msra.mxu0 %v439
    %473 = vmatprep.subr.bf16.mxu0 0
    %474 = vmatpush1.bf16.msra.mxu0 0
    %475 = vmatprep.subr.bf16.mxu0 0
    %476 = vmatpush1.bf16.msra.mxu0 0
    %477 = vmatprep.subr.bf16.mxu0 0
    %478 = vmatpush1.bf16.msra.mxu0 0
    %479 = vmatprep.subr.bf16.mxu0 0
    %480 = vmatpush1.bf16.msra.mxu0 0
    %481 = vmatprep.subr.bf16.mxu0 0
    %482 = vmatpush1.bf16.msra.mxu0 0
    %483 = vmatprep.subr.bf16.mxu0 0
    %484 = vmatpush1.bf16.msra.mxu0 0
    %485 = vmatprep.subr.bf16.mxu0 0
    %486 = vmatpush1.bf16.msra.mxu0 0
    %487 = vmatprep.subr.bf16.mxu0 0
    %488 = vmatpush1.bf16.msra.mxu0 0
    %489 = vmatprep.mubr.bf16.mxu0 0
    %490 = vmatmul.mubr.bf16.gmra.mrb[0].mxu0 %v348
    %v491 = vpop.f32.mrb[0].mxu0
    %v492 = vadd.f32 %v370, %v491
    %v493 = vpop.f32.mrb[0].mxu0
    %v494 = vadd.f32 %v374, %v493
    %v495 = vpop.f32.mrb[0].mxu0
    %v496 = vadd.f32 %v370, %v495
    %v497 = vpop.f32.mrb[0].mxu0
    %v498 = vadd.f32 %v374, %v497
    %499 = vdwg.mxu0
    %v500 = vxor.u32 %v492, 2147483648
    %v501 = vxor.u32 %v494, 2147483648
    %v502 = vxor.u32 %v496, 2147483648
    %v503 = vxor.u32 %v498, 2147483648
    %v504 = vmul.f32 %v500, 1.442695
    %v505 = vpow.pop %v504
    %v506 = vmul.f32 %v501, 1.442695
    %v507 = vpow.pop %v506
    %v508 = vmul.f32 %v502, 1.442695
    %v509 = vpow.pop %v508
    %v510 = vmul.f32 %v503, 1.442695
    %v511 = vpow.pop %v510
    %v512 = vadd.f32 %v505, 1.0
    %v513 = vadd.f32 %v507, 1.0
    %v514 = vadd.f32 %v509, 1.0
    %v515 = vadd.f32 %v511, 1.0
    %v516 = vrcp.pop %v512
    %v517 = vmul.f32 1.0, %v516
    %v518 = vrcp.pop %v513
    %v519 = vmul.f32 1.0, %v518
    %v520 = vrcp.pop %v514
    %v521 = vmul.f32 1.0, %v520
    %v522 = vrcp.pop %v515
    %v523 = vmul.f32 1.0, %v522
    %v524 = vmul.f32 %v231, %v517
    %v525 = vmul.f32 %v232, %v521
    %v526 = vmul.f32 %v231, %v519
    %v527 = vmul.f32 %v232, %v523
    %v528 = vpack.c.bf16 %v525, %v524
    %v529 = vpack.c.bf16 %v527, %v526
    %v530 = vld [vmem:[#allocation10] sm:$0xf]
    %v531 = vld [vmem:[#allocation10 + $0x4] sm:$0xf]
    %v532 = vld [vmem:[#allocation10 + $0x8] sm:$0xf]
    %v533 = vld [vmem:[#allocation10 + $0xc] sm:$0xf]
    %v534 = vld [vmem:[#allocation10 + $0x10] sm:$0xf]
    %v535 = vld [vmem:[#allocation10 + $0x14] sm:$0xf]
    %v536 = vld [vmem:[#allocation10 + $0x18] sm:$0xf]
    %v537 = vld [vmem:[#allocation10 + $0x1c] sm:$0xf]
    %v538 = vld [vmem:[#allocation10 + $0x20] sm:$0xf]
    %v539 = vld [vmem:[#allocation10 + $0x24] sm:$0xf]
    %v540 = vld [vmem:[#allocation10 + $0x28] sm:$0xf]
    %v541 = vld [vmem:[#allocation10 + $0x2c] sm:$0xf]
    %v542 = vld [vmem:[#allocation10 + $0x30] sm:$0xf]
    %v543 = vld [vmem:[#allocation10 + $0x34] sm:$0xf]
    %v544 = vld [vmem:[#allocation10 + $0x38] sm:$0xf]
    %v545 = vld [vmem:[#allocation10 + $0x3c] sm:$0xf]
    %v562 = vunpack.c.l.b16 %v530
    %v563 = vunpack.c.l.b16 %v531
    %v564 = vunpack.c.l.b16 %v532
    %v565 = vunpack.c.l.b16 %v533
    %v566 = vunpack.c.l.b16 %v534
    %v567 = vunpack.c.l.b16 %v535
    %v568 = vunpack.c.l.b16 %v536
    %v569 = vunpack.c.l.b16 %v537
    %v570 = vunpack.c.l.b16 %v538
    %v571 = vunpack.c.l.b16 %v539
    %v572 = vunpack.c.l.b16 %v540
    %v573 = vunpack.c.l.b16 %v541
    %v574 = vunpack.c.l.b16 %v542
    %v575 = vunpack.c.l.b16 %v543
    %v576 = vunpack.c.l.b16 %v544
    %v577 = vunpack.c.l.b16 %v545
    %v578 = vpack.c.b16 %v563, %v562
    %v579 = vpack.c.b16 %v565, %v564
    %v580 = vpack.c.b16 %v567, %v566
    %v581 = vpack.c.b16 %v569, %v568
    %v582 = vpack.c.b16 %v571, %v570
    %v583 = vpack.c.b16 %v573, %v572
    %v584 = vpack.c.b16 %v575, %v574
    %v585 = vpack.c.b16 %v577, %v576
    %594 = vmatprep.subr.bf16.mxu0 0
    %595 = vmatpush1.bf16.msra.mxu0 %v578
    %596 = vmatprep.subr.bf16.mxu0 0
    %597 = vmatpush1.bf16.msra.mxu0 %v579
    %598 = vmatprep.subr.bf16.mxu0 0
    %599 = vmatpush1.bf16.msra.mxu0 %v580
    %600 = vmatprep.subr.bf16.mxu0 0
    %601 = vmatpush1.bf16.msra.mxu0 %v581
    %602 = vmatprep.subr.bf16.mxu0 0
    %603 = vmatpush1.bf16.msra.mxu0 %v582
    %604 = vmatprep.subr.bf16.mxu0 0
    %605 = vmatpush1.bf16.msra.mxu0 %v583
    %606 = vmatprep.subr.bf16.mxu0 0
    %607 = vmatpush1.bf16.msra.mxu0 %v584
    %608 = vmatprep.subr.bf16.mxu0 0
    %609 = vmatpush1.bf16.msra.mxu0 %v585
    %610 = vmatprep.subr.bf16.mxu0 0
    %611 = vmatpush1.bf16.msra.mxu0 0
    %612 = vmatprep.subr.bf16.mxu0 0
    %613 = vmatpush1.bf16.msra.mxu0 0
    %614 = vmatprep.subr.bf16.mxu0 0
    %615 = vmatpush1.bf16.msra.mxu0 0
    %616 = vmatprep.subr.bf16.mxu0 0
    %617 = vmatpush1.bf16.msra.mxu0 0
    %618 = vmatprep.subr.bf16.mxu0 0
    %619 = vmatpush1.bf16.msra.mxu0 0
    %620 = vmatprep.subr.bf16.mxu0 0
    %621 = vmatpush1.bf16.msra.mxu0 0
    %622 = vmatprep.subr.bf16.mxu0 0
    %623 = vmatpush1.bf16.msra.mxu0 0
    %624 = vmatprep.subr.bf16.mxu0 0
    %625 = vmatpush1.bf16.msra.mxu0 0
    %626 = vmatprep.mubr.bf16.mxu0 0
    %627 = vmatmul.mubr.bf16.gmra.mrb[0].mxu0 %v528
    %v628 = vpop.f32.mrb[0].mxu0
    %v629 = vadd.f32 0.0, %v628
    %v630 = vpop.f32.mrb[0].mxu0
    %v631 = vpop.f32.mrb[0].mxu0
    %v632 = vadd.f32 0.0, %v631
    %v633 = vpop.f32.mrb[0].mxu0
    %634 = vmatprep.mubr.bf16.mxu0 0
    %635 = vmatmul.mubr.bf16.gmra.mrb[0].mxu0 %v529
    %v636 = vpop.f32.mrb[0].mxu0
    %v637 = vadd.f32 0.0, %v636
    %v638 = vpop.f32.mrb[0].mxu0
    %v639 = vpop.f32.mrb[0].mxu0
    %v640 = vadd.f32 0.0, %v639
    %v641 = vpop.f32.mrb[0].mxu0
    %642 = vdwg.mxu0
    %644 = vrot.lane.b32.xlu0 %v629, 2048
    %v645 = vpop.permute.xlu0 %644
    %s647 = sor.u32 2048, 64
    %648 = vrot.lane.b32.xlu0 %v632, %s647
    %v649 = vpop.permute.xlu0 %648
    %v650 = vadd.f32 %v645, %v649
    %v651 = vrot.slane %v650, 4
    %v652 = vadd.f32 %v650, %v651
    %v653 = vrot.slane %v652, 2
    %v654 = vadd.f32 %v652, %v653
    %v655 = vrot.slane %v654, 1
    %v656 = vadd.f32 %v654, %v655
    %658 = vrot.lane.b32.xlu0 %v637, 2048
    %v659 = vpop.permute.xlu0 %658
    %s661 = sor.u32 2048, 64
    %662 = vrot.lane.b32.xlu0 %v640, %s661
    %v663 = vpop.permute.xlu0 %662
    %v664 = vadd.f32 %v659, %v663
    %v665 = vrot.slane %v664, 4
    %v666 = vadd.f32 %v664, %v665
    %v667 = vrot.slane %v666, 2
    %v668 = vadd.f32 %v666, %v667
    %v669 = vrot.slane %v668, 1
    %v670 = vadd.f32 %v668, %v669
    %vm671 = vcmask 1040384
    %v672 = vsel %vm671, %v656, %v670
    %673 = vst [vmem:[#allocation11] sm:$0x3] %v672
    // Predicated region
    $region54: #{tpu_custom_call.1} parent=1 // pred_check
      _
    $region55: #{tpu_custom_call.1} parent=1 // pred_check_branch
      %675 = sbr.rel (0) target = $region57
    $region56: #{tpu_custom_call.1} parent=1 // pred_region
      %s677 = ssub.s32 32, 32
      %678 = vsyncadd [#allocation4], %s677
      %s680 = sshll.u32 [#allocation11], 4
      %s681 = int_to_ptr.vmem [resolvable:$true] %s680
      %683 = dma.vmem_to_hbm [thread:$0]  %s681, 32, %s8, [#allocation4]
    $region57: #{tpu_custom_call.1} parent=1 // pred_fallthru
      _
    // Predicated region
    $region58: #{tpu_custom_call.1} parent=1 // pred_check
      _
    $region59: #{tpu_custom_call.1} parent=1 // pred_check_branch
      %685 = sbr.rel (0) target = $region61
    $region60: #{tpu_custom_call.1} parent=1 // pred_region
      %686 = dma.done [#allocation4], 32
    $region61: #{tpu_custom_call.1} parent=1 // pred_fallthru
      _
    %687 = vsyncpa [#allocation3], 1
    %688 = vsyncpa [#allocation6], 1
    %689 = vsyncpa [#allocation9], 1
    %690 = vsyncpa [#allocation4], 1

</llo_original>
